<compile_context>
chip_gen: v5e
topology: v5e:2x2
jax: 0.10.0
libtpu: 0.0.40
codegen_flags: <defaults>
</compile_context>

<pallas_src>
import functools

import numpy as np
import jax
import jax.numpy as jnp
from jax.experimental import pallas as pl
from jax.experimental.pallas import tpu as pltpu

SLAB = (8, 128)  # one f32 vreg tile; logical 3-vector lives at [0, :3]


def _rand_background_kernel(seed_ref, out_ref):
    """Fill one (8,128) vreg with uniform [0,1) floats derived from the scalar
    seed via a portable integer hash. Only [0, :3] is consumed (torch.rand(3))."""
    seed = seed_ref[0].astype(jnp.uint32)
    lane = jax.lax.broadcasted_iota(jnp.int32, SLAB, 1).astype(jnp.uint32)
    sub = jax.lax.broadcasted_iota(jnp.int32, SLAB, 0).astype(jnp.uint32)

    # splitmix/murmur3-style mix of (seed, lane, sublane) -> 32 random bits.
    x = seed + lane * jnp.uint32(0x9E3779B9) + sub * jnp.uint32(0x85EBCA6B)
    x = x ^ (x >> 16)
    x = x * jnp.uint32(0x7FEB352D)
    x = x ^ (x >> 15)
    x = x * jnp.uint32(0x846CA68B)
    x = x ^ (x >> 16)

    # Top 24 bits -> uniform [0, 1) with 24-bit resolution.
    mant = (x >> 8).astype(jnp.int32).astype(jnp.float32)
    out_ref[...] = mant * jnp.float32(1.0 / (1 << 24))


@jax.jit
def _rand_background3(seed_arr: jnp.ndarray) -> jnp.ndarray:
    """torch.rand(3) equivalent: one pallas_call producing a vreg slab, sliced
    under the same jit so the slice fuses with the kernel's output."""
    slab = pl.pallas_call(
        _rand_background_kernel,
        out_shape=jax.ShapeDtypeStruct(SLAB, jnp.float32),
        in_specs=[pl.BlockSpec(memory_space=pltpu.MemorySpace.SMEM)],  # seed scalar
        out_specs=pl.BlockSpec(memory_space=pltpu.MemorySpace.VMEM),   # (8,128) slab
    )(seed_arr)
    return slab[0, :3]


class SceneConfig:
    def __init__(self, random_background: bool = False,
                 scaling_modifier: float = 1.0):
        self.random_background = random_background
        self.scaling_modifier = scaling_modifier


class Scene:
    """JAX/Pallas port of gssr.scene.base_scene.Scene (abstract base).

    Only the concrete tensor path (get_background) is implemented; the rest of
    the class is dataloader / gaussian-model plumbing with abstract stubs.
    """

    def __init__(self, config: SceneConfig, background, seed: int = 0):
        self.config = config
        # Host-side check (no device sync).
        self.white_background = bool(np.all(np.asarray(background) == 1.0))
        self._seed = int(seed) & 0x7FFFFFFF
        self._call_count = 0
        self._raw_background = jnp.asarray(background, dtype=jnp.float32)
        self.background = self.get_background()

    def forward(self):
        # Matches the PyTorch module: blank forward.
        raise NotImplementedError

    def get_background(self):
        if not self.config.random_background:
            # Fixed background: no kernel launch — just the float32 tensor,
            # exactly torch.tensor(background, dtype=float32).
            return self._raw_background
        # Random background: vary the seed per call (torch.rand draws fresh
        # values each step), fold call counter in on the host.
        self._call_count += 1
        seed = (self._seed + self._call_count * 0x632BE5AB) & 0x7FFFFFFF
        return _rand_background3(jnp.array([seed], dtype=jnp.int32))

    # TODO(synk): generate_gaussians / render / get_metrics_dict /
    # get_loss_dict / densify / dataloader plumbing are abstract stubs in the
    # source module (no tensor math defined) and are not translated.


if __name__ == "__main__":
    key = jax.random.PRNGKey(0)

    # Deterministic "dataloader background": white background -> [1, 1, 1].
    background = jnp.ones((3,), dtype=jnp.float32)

    # Path 1: random_background=False -> exact copy of the provided background
    # (no kernel launch; dispatch would dominate a 12-byte copy).
    scene = Scene(SceneConfig(random_background=False), background)
    bg_fixed = jax.block_until_ready(scene.background)
    assert bg_fixed.shape == (3,) and bg_fixed.dtype == jnp.float32
    assert jnp.allclose(bg_fixed, background), bg_fixed
    assert scene.white_background

    # Path 2: random_background=True -> torch.rand(3) equivalent via the
    # Pallas kernel (uniform [0,1)).
    seed = int(jax.random.randint(key, (), 0, 2**31 - 1))
    scene_rand = Scene(SceneConfig(random_background=True), background, seed=seed)
    bg_rand = jax.block_until_ready(scene_rand.background)
    assert bg_rand.shape == (3,) and bg_rand.dtype == jnp.float32
    assert bool(jnp.all(bg_rand >= 0.0) & jnp.all(bg_rand < 1.0)), bg_rand

    # Successive calls draw fresh values (per-step randomization).
    bg_rand2 = jax.block_until_ready(scene_rand.get_background())
    assert bool(jnp.any(bg_rand2 != bg_rand)), (bg_rand, bg_rand2)

    print("KERNEL_OK")
</pallas_src>

<mosaic_0001>
module attributes {stable_mosaic.version = 11 : i64} {
  func.func @_rand_background_kernel(%arg0: memref<1xi32, #tpu.memory_space<smem>>, %arg1: memref<8x128xf32, #tpu.memory_space<vmem>>) attributes {dimension_semantics = [], scalar_prefetch = 0 : i64, scratch_operands = 0 : i64, tpu.core_type = #tpu.core_type<tc>} {
    %c0 = arith.constant 0 : index
    %0 = memref.load %arg0[%c0] : memref<1xi32, #tpu.memory_space<smem>>
    %1 = tpu.iota {dimensions = array<i32: 1>} : vector<8x128xi32>
    %2 = tpu.iota {dimensions = array<i32: 0>} : vector<8x128xi32>
    %c-1640531527_i32 = arith.constant -1640531527 : i32
    %3 = vector.broadcast %c-1640531527_i32 : i32 to vector<8x128xi32>
    %4 = arith.muli %1, %3 : vector<8x128xi32>
    %5 = vector.broadcast %0 : i32 to vector<8x128xi32>
    %6 = arith.addi %5, %4 : vector<8x128xi32>
    %c-2048144789_i32 = arith.constant -2048144789 : i32
    %7 = vector.broadcast %c-2048144789_i32 : i32 to vector<8x128xi32>
    %8 = arith.muli %2, %7 : vector<8x128xi32>
    %9 = arith.addi %6, %8 : vector<8x128xi32>
    %c16_i32 = arith.constant 16 : i32
    %10 = vector.broadcast %c16_i32 : i32 to vector<8x128xi32>
    %11 = arith.shrui %9, %10 : vector<8x128xi32>
    %12 = arith.xori %9, %11 : vector<8x128xi32>
    %c2146121005_i32 = arith.constant 2146121005 : i32
    %13 = vector.broadcast %c2146121005_i32 : i32 to vector<8x128xi32>
    %14 = arith.muli %12, %13 : vector<8x128xi32>
    %c15_i32 = arith.constant 15 : i32
    %15 = vector.broadcast %c15_i32 : i32 to vector<8x128xi32>
    %16 = arith.shrui %14, %15 : vector<8x128xi32>
    %17 = arith.xori %14, %16 : vector<8x128xi32>
    %c-2073254261_i32 = arith.constant -2073254261 : i32
    %18 = vector.broadcast %c-2073254261_i32 : i32 to vector<8x128xi32>
    %19 = arith.muli %17, %18 : vector<8x128xi32>
    %c16_i32_0 = arith.constant 16 : i32
    %20 = vector.broadcast %c16_i32_0 : i32 to vector<8x128xi32>
    %21 = arith.shrui %19, %20 : vector<8x128xi32>
    %22 = arith.xori %19, %21 : vector<8x128xi32>
    %c8_i32 = arith.constant 8 : i32
    %23 = vector.broadcast %c8_i32 : i32 to vector<8x128xi32>
    %24 = arith.shrui %22, %23 : vector<8x128xi32>
    %25 = arith.sitofp %24 : vector<8x128xi32> to vector<8x128xf32>
    %cst = arith.constant 5.96046448E-8 : f32
    %26 = vector.broadcast %cst : f32 to vector<8x128xf32>
    %27 = arith.mulf %25, %26 : vector<8x128xf32>
    %c0_1 = arith.constant 0 : index
    %c0_2 = arith.constant 0 : index
    %28 = vector.load %arg1[%c0_1, %c0_2] : memref<8x128xf32, #tpu.memory_space<vmem>>, vector<8x128xf32>
    tpu.vector_store %arg1[%c0_1, %c0_2], %27 {strides = array<i32>} : memref<8x128xf32, #tpu.memory_space<vmem>>, vector<8x128xf32>,
    return
  }
}

</mosaic_0001>

<llo_original>
// kernel: _rand_background3.1
$region0: #{_rand_background3.1}
  #allocation0 [shape = 'u32[]', space=smem, size = 0x4, offset = 0x4, fixed_abs, tag = 'smem constant byte address 0x4 - core index']
  #allocation1 [shape = 'u32[72,128]{1,0:T(1,128)}', space=vmem, size = 0x9000, scoped, tag = 'internal scratch']
  #allocation2 [shape = 's32[1]{0:T(128)S(6)}', space=smem, size = 0x200, scoped, tag = 'scoped memory for _rand_background3.1']
  %s0 = inlined_call_operand.<no memory space> [shape: s32[1], index: 0, kind: input, shape index: {}]
  %s1 = inlined_call_operand.vmem [shape: f32[8,128], index: 1, kind: output, shape index: {}]
  %s2 = sld [smem:[#allocation0]]
  $region14: #{_rand_background3.1} parent=0
    _
  %s4 = ssub.s32 1, %s2
  %s5 = scalar_select 0, %s4, %s2
  %6 = sst [smem:[#allocation2]] %s0
  // Predicated region
  $region2: #{_rand_background3.1} parent=0 // pred_check
    _
  $region3: #{_rand_background3.1} parent=0 // pred_check_branch
    %8 = sbr.rel (0) target = $region5
  $region4: #{_rand_background3.1} parent=0 // pred_region
    _
  $region5: #{_rand_background3.1} parent=0 // pred_fallthru
    _
  %s9 = sld [smem:[#allocation2]]
  %v10 = vlaneseq
  %v11 = vand.u32 %v10, 127
  %v12 = vlaneseq
  %v13 = vshrl.u32 %v12, 7
  %v14 = vmul.u32 %v11, 2654435769
  %v15 = vstv %s9
  %v16 = vadd.s32 %v15, %v14
  %v17 = vmul.u32 %v13, 2246822507
  %v18 = vadd.s32 %v16, %v17
  %v19 = vshrl.u32 %v18, 16
  %v20 = vxor.u32 %v18, %v19
  %v21 = vmul.u32 %v20, 2146121005
  %v22 = vshrl.u32 %v21, 15
  %v23 = vxor.u32 %v21, %v22
  %v24 = vmul.u32 %v23, 2221713035
  %v25 = vshrl.u32 %v24, 16
  %v26 = vxor.u32 %v24, %v25
  %v27 = vshrl.u32 %v26, 8
  %v28 = vcvt.s32.f32 %v27
  %v29 = vmul.f32 %v28, 5.9604645e-08
  %30 = vst [vmem:[%s1] sm:$0xff] %v29
  // Predicated region
  $region6: #{_rand_background3.1} parent=0 // pred_check
    _
  $region7: #{_rand_background3.1} parent=0 // pred_check_branch
    %32 = sbr.rel (0) target = $region9
  $region8: #{_rand_background3.1} parent=0 // pred_region
    _
  $region9: #{_rand_background3.1} parent=0 // pred_fallthru
    _
  // Predicated region
  $region10: #{_rand_background3.1} parent=0 // pred_check
    _
  $region11: #{_rand_background3.1} parent=0 // pred_check_branch
    %34 = sbr.rel (0) target = $region13
  $region12: #{_rand_background3.1} parent=0 // pred_region
    _
  $region13: #{_rand_background3.1} parent=0 // pred_fallthru
    _

</llo_original>
